<compile_context>
chip_gen: v5e
topology: v5e:2x2
jax: 0.10.0
libtpu: 0.0.40
codegen_flags: <defaults>
</compile_context>

<pallas_src>
import functools

import jax
import jax.numpy as jnp
from jax import lax
from jax.experimental import pallas as pl
from jax.experimental.pallas import tpu as pltpu

C_TILE = 128  # lane width; channels are processed 128 at a time.


def _roll_probe_kernel(x_ref, o_ref):
    o_ref[...] = pltpu.roll(x_ref[...], 1, axis=0)


@functools.cache
def _roll_matches_jnp():
    """True iff pltpu.roll(x, s, axis) follows jnp.roll's shift convention on this backend."""
    x = jnp.arange(64 * 128, dtype=jnp.float32).reshape(64, 128)
    y = pl.pallas_call(
        _roll_probe_kernel,
        out_shape=jax.ShapeDtypeStruct((64, 128), jnp.float32),
    )(x)
    return bool(jnp.array_equal(y, jnp.roll(x, 1, axis=0)))


def _make_dwconv_kernel(D, H, W, CT, shift_m, shift_p):
    HW = H * W

    def dwconv_kernel(x_ref, w_ref, b_ref, o_ref):
        # x_ref: (1, D, H, W, CT)  input block, channels-last
        # w_ref: (27, W, CT)       per-tap weights, broadcast along W, kw-boundary rows zeroed
        # b_ref: (W, CT)           bias, broadcast along W
        # o_ref: (1, D, H, W, CT)  output block

        def compute_body(d, carry):
            # Accumulator starts at the bias (broadcast over H is a leading-dim broadcast; kept
            # per-slab instead of hoisted to avoid 8 extra resident vregs across the loop).
            acc = jnp.broadcast_to(b_ref[...], (H, W, CT))
            for kd in range(3):
                if kd == 1:
                    src = x_ref[0, d].astype(jnp.float32)
                else:
                    sd = d + kd - 1
                    valid = jnp.logical_and(sd >= 0, sd < D).astype(jnp.float32)
                    src = x_ref[0, jnp.clip(sd, 0, D - 1)].astype(jnp.float32) * valid
                # x[.., w-1] / x[.., w+1] via a sublane rotation of the flattened (H*W, CT) view;
                # the wrapped column is zeroed by the boundary row baked into that tap's weight.
                flat = src.reshape(HW, CT)
                src_m = pltpu.roll(flat, shift_m, axis=0).reshape(H, W, CT)  # x[.., w-1]
                src_p = pltpu.roll(flat, shift_p, axis=0).reshape(H, W, CT)  # x[.., w+1]
                for kh in range(3):
                    t = (kd * 3 + kh) * 3  # tap index base: (kd, kh, kw=0)
                    if kh == 1:
                        acc = acc + (src_m * w_ref[t] + src * w_ref[t + 1]
                                     + src_p * w_ref[t + 2])
                    elif kh == 0:
                        # out[h] uses x[h-1]: add to acc rows 1..H-1 from src rows 0..H-2.
                        row = (src_m[:H - 1] * w_ref[t] + src[:H - 1] * w_ref[t + 1]
                               + src_p[:H - 1] * w_ref[t + 2])
                        acc = jnp.concatenate([acc[:1], acc[1:] + row], axis=0)
                    else:  # kh == 2
                        # out[h] uses x[h+1]: add to acc rows 0..H-2 from src rows 1..H-1.
                        row = (src_m[1:] * w_ref[t] + src[1:] * w_ref[t + 1]
                               + src_p[1:] * w_ref[t + 2])
                        acc = jnp.concatenate([acc[:H - 1] + row, acc[H - 1:]], axis=0)
            o_ref[0, d] = acc.astype(o_ref.dtype)
            return carry

        lax.fori_loop(0, D, compute_body, 0, unroll=2)

    return dwconv_kernel


def dwconv_pallas(x, weight, bias, D, H, W):
    """x: (B, N, C) with N = D*H*W. weight: (C, 1, 3, 3, 3) (PyTorch layout). bias: (C,)."""
    B, N, C = x.shape
    assert N == D * H * W

    # Pad channels up to a multiple of the 128-lane tile so every load/store is lane-dense.
    Cp = ((C + C_TILE - 1) // C_TILE) * C_TILE

    # (B, N, C) -> (B, D, H, W, C); matches transpose(1,2).view(B,C,D,H,W): n = (d*H + h)*W + w.
    xv = x.reshape(B, D, H, W, C)
    if Cp != C:
        xv = jnp.pad(xv, ((0, 0),) * 4 + ((0, Cp - C),))

    # weight (C,1,3,3,3) -> (3,3,3,C) channels-last, f32.
    w_cl = jnp.transpose(weight[:, 0], (1, 2, 3, 0)).astype(jnp.float32)
    if Cp != C:
        w_cl = jnp.pad(w_cl, ((0, 0),) * 3 + ((0, Cp - C),))
    # Broadcast along W and zero the boundary row of the kw=0 / kw=2 taps; those zero rows kill
    # the column that wraps around in the in-kernel sublane rotation, i.e. they implement the
    # W-direction zero padding.  DMA'd once per channel tile thanks to the channel-outer grid.
    wpos = jnp.arange(W, dtype=jnp.float32)
    kw_mask = jnp.stack(
        [(wpos > 0), jnp.ones((W,), dtype=bool), (wpos < W - 1)], axis=0
    ).astype(jnp.float32)                                        # (3, W)
    w_b = w_cl[:, :, :, None, :] * kw_mask[None, None, :, :, None]  # (3, 3, 3, W, Cp)
    w_b = w_b.reshape(27, W, Cp)                                 # tap t = (kd*3 + kh)*3 + kw

    b_cl = bias.astype(jnp.float32)
    if Cp != C:
        b_cl = jnp.pad(b_cl, ((0, Cp - C),))
    b_b = jnp.broadcast_to(b_cl[None, :], (W, Cp))

    HW = H * W
    if _roll_matches_jnp():
        shift_m, shift_p = 1, HW - 1   # jnp.roll convention: out[i] = x[i - shift]
    else:
        shift_m, shift_p = HW - 1, 1   # opposite convention

    kernel = _make_dwconv_kernel(D, H, W, C_TILE, shift_m, shift_p)

    out = pl.pallas_call(
        kernel,
        out_shape=jax.ShapeDtypeStruct((B, D, H, W, Cp), x.dtype),
        grid_spec=pltpu.PrefetchScalarGridSpec(
            num_scalar_prefetch=0,
            # Channels outermost: weight/bias block indices are constant across the inner batch
            # axis, so Pallas keeps them resident in VMEM.  Both axes are data-parallel
            # (megacore sharding on v7x; B>=2 keeps the second core busy even when C == 128).
            grid=(Cp // C_TILE, B),
            in_specs=[
                pl.BlockSpec((1, D, H, W, C_TILE), lambda c, b: (b, 0, 0, 0, c)),
                pl.BlockSpec((27, W, C_TILE), lambda c, b: (0, 0, c)),
                pl.BlockSpec((W, C_TILE), lambda c, b: (0, c)),
            ],
            out_specs=pl.BlockSpec((1, D, H, W, C_TILE), lambda c, b: (b, 0, 0, 0, c)),
        ),
        compiler_params=pltpu.CompilerParams(
            dimension_semantics=("parallel", "parallel"),
        ),
    )(xv, w_b, b_b)

    if Cp != C:
        out = out[..., :C]
    # (B, D, H, W, C) -> (B, N, C), matching flatten(2).transpose(1,2)
    return out.reshape(B, N, C)


def dwconv_reference(x, weight, bias, D, H, W):
    """Pure-JAX reference reproducing the PyTorch nn.Conv3d(groups=C) forward."""
    B, N, C = x.shape
    xn = jnp.transpose(x, (0, 2, 1)).reshape(B, C, D, H, W)  # NCDHW
    y = lax.conv_general_dilated(
        xn, weight,
        window_strides=(1, 1, 1),
        padding=((1, 1), (1, 1), (1, 1)),
        dimension_numbers=("NCDHW", "OIDHW", "NCDHW"),
        feature_group_count=C,
    )
    y = y + bias.reshape(1, C, 1, 1, 1)
    return jnp.transpose(y.reshape(B, C, N), (0, 2, 1))  # (B, N, C)


if __name__ == "__main__":
    # Small deterministic example: dim (channels) = 128 (one full lane tile), D = H = W = 8
    # -> N = 512, batch = 2.
    B, C = 2, 128
    D = H = W = 8
    N = D * H * W

    key = jax.random.PRNGKey(0)
    kx, kwt, kb = jax.random.split(key, 3)
    x = jax.random.normal(kx, (B, N, C), dtype=jnp.float32)
    # nn.Conv3d(dim, dim, 3, 1, 1, groups=dim): weight (C, 1, 3, 3, 3), bias (C,)
    weight = jax.random.normal(kwt, (C, 1, 3, 3, 3), dtype=jnp.float32) * 0.1
    bias = jax.random.normal(kb, (C,), dtype=jnp.float32) * 0.1

    out = dwconv_pallas(x, weight, bias, D, H, W)
    out = jax.block_until_ready(out)

    ref = dwconv_reference(x, weight, bias, D, H, W)
    assert out.shape == (B, N, C)
    assert jnp.allclose(out, ref, atol=1e-4, rtol=1e-4), "mismatch vs reference conv"

    print("KERNEL_OK")
</pallas_src>

<mosaic_0001>
module attributes {stable_mosaic.version = 11 : i64} {
  func.func @_roll_probe_kernel(%arg0: memref<64x128xf32, #tpu.memory_space<vmem>>, %arg1: memref<64x128xf32, #tpu.memory_space<vmem>>) attributes {dimension_semantics = [], scalar_prefetch = 0 : i64, scratch_operands = 0 : i64, tpu.core_type = #tpu.core_type<tc>} {
    %c0 = arith.constant 0 : index
    %c0_0 = arith.constant 0 : index
    %0 = vector.load %arg0[%c0, %c0_0] : memref<64x128xf32, #tpu.memory_space<vmem>>, vector<64x128xf32>
    %c1_i32 = arith.constant 1 : i32
    %1 = tpu.dynamic_rotate %0 by %c1_i32 dim 0 : vector<64x128xf32>, i32 -> vector<64x128xf32>
    %c0_1 = arith.constant 0 : index
    %c0_2 = arith.constant 0 : index
    %2 = vector.load %arg1[%c0_1, %c0_2] : memref<64x128xf32, #tpu.memory_space<vmem>>, vector<64x128xf32>
    tpu.vector_store %arg1[%c0_1, %c0_2], %1 {strides = array<i32>} : memref<64x128xf32, #tpu.memory_space<vmem>>, vector<64x128xf32>,
    return
  }
}

</mosaic_0001>

<llo_original>
// kernel: tpu_custom_call.1
$region0: #{tpu_custom_call.1}
  #allocation0 [shape = 'u32[]', space=smem, size = 0x4, offset = 0x4, fixed_abs, tag = 'smem constant byte address 0x4 - core index']
  #allocation1 [shape = 'u32[72,128]{1,0:T(1,128)}', space=vmem, size = 0x9000, scoped, tag = 'internal scratch']
  %s0 = inlined_call_operand.hbm [shape: f32[64,128], index: 0, kind: input, shape index: {}]
  %s1 = inlined_call_operand.hbm [shape: f32[64,128], index: 1, kind: output, shape index: {}]
  %s2 = sld [smem:[#allocation0]]
  $region18: #{tpu_custom_call.1} parent=0
    _
  %s4 = ssub.s32 1, %s2
  %s5 = scalar_select 0, %s4, %s2
  $region1: #{tpu_custom_call.1} parent=0
    #allocation2 [shape = 'u8[32768]{0}', space=vmem, size = 0x8000, scoped, tag = 'input window, operand 0, single buffered']
    #allocation3 [shape = 's32[1]{0}', space=sflag, size = 0x4, scoped, tag = 'scoped memory for tpu_custom_call.1']
    #allocation4 [shape = 's32[1]{0}', space=sflag, size = 0x4, scoped, tag = 'scoped memory for tpu_custom_call.1']
    #allocation5 [shape = 'u8[32768]{0}', space=vmem, size = 0x8000, scoped, tag = 'output window, operand 0, single buffered']
    %6 = vsyncpa [#allocation3], 0
    %7 = vsyncpa [#allocation4], 0
    // Predicated region
    $region2: #{tpu_custom_call.1} parent=1 // pred_check
      _
    $region3: #{tpu_custom_call.1} parent=1 // pred_check_branch
      %9 = sbr.rel (0) target = $region5
    $region4: #{tpu_custom_call.1} parent=1 // pred_region
      %11 = vsyncadd [#allocation3], 0
      %s12 = sshll.u32 %s0, 4
      %s13 = int_to_ptr.hbm [resolvable:$true] %s12
      %s14 = sshll.u32 [#allocation2], 4
      %s15 = int_to_ptr.vmem [resolvable:$true] %s14
      %20 = dma.hbm_to_vmem [thread:$0]  %s13, 1024, %s15, [#allocation3], 128, 128, 8
    $region5: #{tpu_custom_call.1} parent=1 // pred_fallthru
      _
    // Predicated region
    $region6: #{tpu_custom_call.1} parent=1 // pred_check
      _
    $region7: #{tpu_custom_call.1} parent=1 // pred_check_branch
      %22 = sbr.rel (0) target = $region9
    $region8: #{tpu_custom_call.1} parent=1 // pred_region
      %24 = dma.done [#allocation3], 1024
    $region9: #{tpu_custom_call.1} parent=1 // pred_fallthru
      _
    %v25 = vld [vmem:[#allocation2] sm:$0xff]
    %v26 = vld [vmem:[#allocation2 + $0x8] sm:$0xff]
    %v27 = vld [vmem:[#allocation2 + $0x10] sm:$0xff]
    %v28 = vld [vmem:[#allocation2 + $0x18] sm:$0xff]
    %v29 = vld [vmem:[#allocation2 + $0x20] sm:$0xff]
    %v30 = vld [vmem:[#allocation2 + $0x28] sm:$0xff]
    %v31 = vld [vmem:[#allocation2 + $0x30] sm:$0xff]
    %v32 = vld [vmem:[#allocation2 + $0x38] sm:$0xff]
    %v33 = vrot.slane %v25, 7
    %v34 = vrot.slane %v26, 7
    %v35 = vrot.slane %v27, 7
    %v36 = vrot.slane %v28, 7
    %v37 = vrot.slane %v29, 7
    %v38 = vrot.slane %v30, 7
    %v39 = vrot.slane %v31, 7
    %v40 = vrot.slane %v32, 7
    %v41 = vlaneseq
    %v42 = vshrl.u32 %v41, 7
    %vm43 = vcmp.lt.s32.totalorder %v42, 1
    %v44 = vsel %vm43, %v39, %v40
    %v45 = vsel %vm43, %v38, %v39
    %v46 = vsel %vm43, %v37, %v38
    %v47 = vsel %vm43, %v36, %v37
    %v48 = vsel %vm43, %v35, %v36
    %v49 = vsel %vm43, %v34, %v35
    %v50 = vsel %vm43, %v33, %v34
    %v51 = vsel %vm43, %v40, %v33
    %52 = vst [vmem:[#allocation5] sm:$0xff] %v51
    %53 = vst [vmem:[#allocation5 + $0x8] sm:$0xff] %v50
    %54 = vst [vmem:[#allocation5 + $0x10] sm:$0xff] %v49
    %55 = vst [vmem:[#allocation5 + $0x18] sm:$0xff] %v48
    %56 = vst [vmem:[#allocation5 + $0x20] sm:$0xff] %v47
    %57 = vst [vmem:[#allocation5 + $0x28] sm:$0xff] %v46
    %58 = vst [vmem:[#allocation5 + $0x30] sm:$0xff] %v45
    %59 = vst [vmem:[#allocation5 + $0x38] sm:$0xff] %v44
    // Predicated region
    $region10: #{tpu_custom_call.1} parent=1 // pred_check
      _
    $region11: #{tpu_custom_call.1} parent=1 // pred_check_branch
      %61 = sbr.rel (0) target = $region13
    $region12: #{tpu_custom_call.1} parent=1 // pred_region
      %63 = vsyncadd [#allocation4], 0
      %s64 = sshll.u32 [#allocation5], 4
      %s65 = int_to_ptr.vmem [resolvable:$true] %s64
      %s66 = sshll.u32 %s1, 4
      %s67 = int_to_ptr.hbm [resolvable:$true] %s66
      %72 = dma.vmem_to_hbm [thread:$0]  %s65, 1024, %s67, [#allocation4], 128, 128, 8
    $region13: #{tpu_custom_call.1} parent=1 // pred_fallthru
      _
    // Predicated region
    $region14: #{tpu_custom_call.1} parent=1 // pred_check
      _
    $region15: #{tpu_custom_call.1} parent=1 // pred_check_branch
      %74 = sbr.rel (0) target = $region17
    $region16: #{tpu_custom_call.1} parent=1 // pred_region
      %76 = dma.done [#allocation4], 1024
    $region17: #{tpu_custom_call.1} parent=1 // pred_fallthru
      _
    %77 = vsyncpa [#allocation3], 1
    %78 = vsyncpa [#allocation4], 1

</llo_original>
